<compile_context>
chip_gen: v6e
topology: v6e:2x2x1
jax: 0.10.0
libtpu: 0.0.40
codegen_flags: <defaults>
</compile_context>

<pallas_src>
import functools

import jax
import jax.numpy as jnp
from jax.experimental import pallas as pl
from jax.experimental.pallas import tpu as pltpu


def _round_up(a: int, b: int) -> int:
    return (a + b - 1) // b * b


def _soft_hist_kernel(x_ref, o_ref, *, bins, min_value, max_value, sigma):
    """x_ref: (row_tile, n_tile) chunk; o_ref: (row_tile, bins) accumulator."""
    k = pl.program_id(1)

    @pl.when(k == 0)
    def _():
        o_ref[...] = jnp.zeros_like(o_ref)

    delta = (max_value - min_value) / bins
    half_sigma = 0.5 * sigma

    x = x_ref[...]                      # (TR, TN) f32, dense (8,128)-tiled
    a = half_sigma * x                  # hoisted: one VALU mul per element

    def edge_sum(j):
        # Edge threshold is a compile-time Python float -> splatted constant.
        t = a - (half_sigma * (min_value + delta * j))        # (TR, TN) VALU
        return jnp.sum(jnp.tanh(t), axis=-1, keepdims=True)   # EUP + XLU -> (TR, 1)

    # Unrolled loop over bins+1 edges; each big temp dies right after its
    # reduction, so only per-bin (TR, 1) sums stay live.
    prev = edge_sum(0)
    cols = []
    for j in range(1, bins + 1):
        cur = edge_sum(j)
        cols.append(prev - cur)
        prev = cur

    # Per-chunk per-bin counts; accumulate into the resident output block.
    o_ref[...] += 0.5 * jnp.concatenate(cols, axis=-1)        # (TR, bins)


def soft_histogram(x, bins, min_value, max_value, sigma=100.0):
    B, C, H, W = x.shape
    R, N = B * C, H * W
    min_value = float(min_value)
    max_value = float(max_value)
    sigma = float(sigma)
    num_edges = bins + 1

    # --- tile selection ---------------------------------------------------
    # Input block (row_tile, n_tile): sublane multiple of 8, lane multiple of
    # 128.  Only 2-D (row_tile, n_tile) temporaries live at a time, so VMEM is
    # comfortable even at large tiles; cap row_tile at 64 to bound row-padding
    # waste (kernel is compute-bound, padded rows cost real EUP work).
    row_tile = min(_round_up(R, 8), 64)
    n_tile = min(_round_up(N, 128), 2048)

    Rp = _round_up(R, row_tile)
    Np = _round_up(N, n_tile)

    # Pad sentinel: half_sigma*(pad - e_j) <= -20 for every edge, so tanh
    # saturates to exactly -1.0 (f32) at all edges and padded elements
    # contribute exactly 0 to every bin.
    pad_val = min_value - 40.0 / max(sigma, 1e-6)

    xr = x.reshape(R, N).astype(jnp.float32)
    if Rp != R or Np != N:
        xr = jnp.pad(xr, ((0, Rp - R), (0, Np - N)), constant_values=pad_val)

    grid = (Rp // row_tile, Np // n_tile)

    kernel = functools.partial(
        _soft_hist_kernel,
        bins=bins, min_value=min_value, max_value=max_value, sigma=sigma)

    cost = pl.CostEstimate(
        flops=4 * Rp * Np * num_edges,
        transcendentals=Rp * Np * num_edges,
        bytes_accessed=Rp * Np * 4 + Rp * bins * 4,
    )

    out = pl.pallas_call(
        kernel,
        out_shape=jax.ShapeDtypeStruct((Rp, bins), jnp.float32),
        grid_spec=pltpu.PrefetchScalarGridSpec(
            num_scalar_prefetch=0,
            grid=grid,
            in_specs=[pl.BlockSpec((row_tile, n_tile), lambda i, k: (i, k))],
            out_specs=pl.BlockSpec((row_tile, bins), lambda i, k: (i, 0)),
        ),
        compiler_params=pltpu.CompilerParams(
            dimension_semantics=("parallel", "arbitrary"),
            vmem_limit_bytes=32 * 1024 * 1024,
        ),
        cost_estimate=cost,
    )(xr)

    return out[:R].reshape(B, C, bins)


class HistogramLayer:
    """JAX/Pallas port of the PyTorch HistogramLayer (no learnable params)."""

    def __init__(self, bins: int, min: float, max: float, sigma: float = 100.0):
        self.bins = bins
        self.min_value = min
        self.max_value = max
        self.sigma = sigma

    def __call__(self, x):
        return soft_histogram(
            x, self.bins, self.min_value, self.max_value, self.sigma
        )


def _reference_soft_histogram(x, bins, min_value, max_value, sigma):
    """Pure-JAX reference (center +/- delta/2 sigmoid-difference form)."""
    B, C, H, W = x.shape
    delta = (max_value - min_value) / bins
    centers = min_value + delta * (jnp.arange(bins, dtype=jnp.float32) + 0.5)
    xr = x.reshape(B, C, H * W, 1).astype(jnp.float32)
    diff = xr - centers[None, None, None, :]
    soft = jax.nn.sigmoid(sigma * (diff + delta / 2)) - jax.nn.sigmoid(
        sigma * (diff - delta / 2)
    )
    return soft.sum(axis=2)  # (B, C, bins)


if __name__ == "__main__":
    key = jax.random.PRNGKey(0)
    bins, vmin, vmax, sigma = 16, 0.0, 1.0, 100.0
    layer = HistogramLayer(bins, vmin, vmax, sigma)

    # Case 1: aligned shapes.
    B, C, H, W = 2, 4, 16, 16
    x = jax.random.uniform(key, (B, C, H, W), dtype=jnp.float32)
    out = jax.block_until_ready(layer(x))
    ref = _reference_soft_histogram(x, bins, vmin, vmax, sigma)
    assert out.shape == (B, C, bins), out.shape
    assert jnp.allclose(out, ref, atol=1e-2, rtol=1e-2), float(
        jnp.max(jnp.abs(out - ref)))

    # Case 2: ragged shapes (exercises row/N padding path).
    x2 = jax.random.uniform(jax.random.PRNGKey(1), (1, 3, 7, 9), dtype=jnp.float32)
    out2 = jax.block_until_ready(layer(x2))
    ref2 = _reference_soft_histogram(x2, bins, vmin, vmax, sigma)
    assert out2.shape == (1, 3, bins), out2.shape
    assert jnp.allclose(out2, ref2, atol=1e-2, rtol=1e-2), float(
        jnp.max(jnp.abs(out2 - ref2)))

    print("KERNEL_OK")
</pallas_src>

<mosaic_0001>
module attributes {stable_mosaic.version = 11 : i64} {
  func.func @_soft_hist_kernel(%arg0: i32, %arg1: i32, %arg2: memref<8x256xf32, #tpu.memory_space<vmem>>, %arg3: memref<8x16xf32, #tpu.memory_space<vmem>>) attributes {dimension_semantics = [#tpu.dimension_semantics<parallel>, #tpu.dimension_semantics<arbitrary>], iteration_bounds = array<i64: 1, 1>, scalar_prefetch = 0 : i64, scratch_operands = 0 : i64, tpu.core_type = #tpu.core_type<tc>, window_params = [{transform_indices = @transform_0, window_bounds = array<i64: 8, 256>}, {transform_indices = @transform_1, window_bounds = array<i64: 8, 16>}]} {
    %c0_i32 = arith.constant 0 : i32
    %0 = arith.cmpi eq, %arg1, %c0_i32 : i32
    %1 = arith.extui %0 : i1 to i32
    %c0_i32_0 = arith.constant 0 : i32
    %2 = arith.cmpi ne, %1, %c0_i32_0 : i32
    scf.if %2 {
      %cst_41 = arith.constant 0.000000e+00 : f32
      %113 = vector.broadcast %cst_41 : f32 to vector<8x16xf32>
      %c0_42 = arith.constant 0 : index
      %c0_43 = arith.constant 0 : index
      %114 = vector.load %arg3[%c0_42, %c0_43] : memref<8x16xf32, #tpu.memory_space<vmem>>, vector<8x16xf32>
      tpu.vector_store %arg3[%c0_42, %c0_43], %113 {strides = array<i32>} : memref<8x16xf32, #tpu.memory_space<vmem>>, vector<8x16xf32>,
    } else {
    }
    %c0 = arith.constant 0 : index
    %c0_1 = arith.constant 0 : index
    %3 = vector.load %arg2[%c0, %c0_1] : memref<8x256xf32, #tpu.memory_space<vmem>>, vector<8x256xf32>
    %cst = arith.constant 5.000000e+01 : f32
    %4 = vector.broadcast %cst : f32 to vector<8x256xf32>
    %5 = arith.mulf %4, %3 : vector<8x256xf32>
    %cst_2 = arith.constant 0.000000e+00 : f32
    %6 = vector.broadcast %cst_2 : f32 to vector<8x256xf32>
    %7 = arith.subf %5, %6 : vector<8x256xf32>
    %8 = math.tanh %7 : vector<8x256xf32>
    %cst_3 = arith.constant dense<0.000000e+00> : vector<8xf32>
    %9 = vector.multi_reduction <add>, %8, %cst_3 [1] : vector<8x256xf32> to vector<8xf32>
    %10 = vector.shape_cast %9 : vector<8xf32> to vector<8x1xf32>
    %cst_4 = arith.constant 3.125000e+00 : f32
    %11 = vector.broadcast %cst_4 : f32 to vector<8x256xf32>
    %12 = arith.subf %5, %11 : vector<8x256xf32>
    %13 = math.tanh %12 : vector<8x256xf32>
    %cst_5 = arith.constant dense<0.000000e+00> : vector<8xf32>
    %14 = vector.multi_reduction <add>, %13, %cst_5 [1] : vector<8x256xf32> to vector<8xf32>
    %15 = vector.shape_cast %14 : vector<8xf32> to vector<8x1xf32>
    %16 = arith.subf %10, %15 : vector<8x1xf32>
    %cst_6 = arith.constant 6.250000e+00 : f32
    %17 = vector.broadcast %cst_6 : f32 to vector<8x256xf32>
    %18 = arith.subf %5, %17 : vector<8x256xf32>
    %19 = math.tanh %18 : vector<8x256xf32>
    %cst_7 = arith.constant dense<0.000000e+00> : vector<8xf32>
    %20 = vector.multi_reduction <add>, %19, %cst_7 [1] : vector<8x256xf32> to vector<8xf32>
    %21 = vector.shape_cast %20 : vector<8xf32> to vector<8x1xf32>
    %22 = arith.subf %15, %21 : vector<8x1xf32>
    %cst_8 = arith.constant 9.375000e+00 : f32
    %23 = vector.broadcast %cst_8 : f32 to vector<8x256xf32>
    %24 = arith.subf %5, %23 : vector<8x256xf32>
    %25 = math.tanh %24 : vector<8x256xf32>
    %cst_9 = arith.constant dense<0.000000e+00> : vector<8xf32>
    %26 = vector.multi_reduction <add>, %25, %cst_9 [1] : vector<8x256xf32> to vector<8xf32>
    %27 = vector.shape_cast %26 : vector<8xf32> to vector<8x1xf32>
    %28 = arith.subf %21, %27 : vector<8x1xf32>
    %cst_10 = arith.constant 1.250000e+01 : f32
    %29 = vector.broadcast %cst_10 : f32 to vector<8x256xf32>
    %30 = arith.subf %5, %29 : vector<8x256xf32>
    %31 = math.tanh %30 : vector<8x256xf32>
    %cst_11 = arith.constant dense<0.000000e+00> : vector<8xf32>
    %32 = vector.multi_reduction <add>, %31, %cst_11 [1] : vector<8x256xf32> to vector<8xf32>
    %33 = vector.shape_cast %32 : vector<8xf32> to vector<8x1xf32>
    %34 = arith.subf %27, %33 : vector<8x1xf32>
    %cst_12 = arith.constant 1.562500e+01 : f32
    %35 = vector.broadcast %cst_12 : f32 to vector<8x256xf32>
    %36 = arith.subf %5, %35 : vector<8x256xf32>
    %37 = math.tanh %36 : vector<8x256xf32>
    %cst_13 = arith.constant dense<0.000000e+00> : vector<8xf32>
    %38 = vector.multi_reduction <add>, %37, %cst_13 [1] : vector<8x256xf32> to vector<8xf32>
    %39 = vector.shape_cast %38 : vector<8xf32> to vector<8x1xf32>
    %40 = arith.subf %33, %39 : vector<8x1xf32>
    %cst_14 = arith.constant 1.875000e+01 : f32
    %41 = vector.broadcast %cst_14 : f32 to vector<8x256xf32>
    %42 = arith.subf %5, %41 : vector<8x256xf32>
    %43 = math.tanh %42 : vector<8x256xf32>
    %cst_15 = arith.constant dense<0.000000e+00> : vector<8xf32>
    %44 = vector.multi_reduction <add>, %43, %cst_15 [1] : vector<8x256xf32> to vector<8xf32>
    %45 = vector.shape_cast %44 : vector<8xf32> to vector<8x1xf32>
    %46 = arith.subf %39, %45 : vector<8x1xf32>
    %cst_16 = arith.constant 2.187500e+01 : f32
    %47 = vector.broadcast %cst_16 : f32 to vector<8x256xf32>
    %48 = arith.subf %5, %47 : vector<8x256xf32>
    %49 = math.tanh %48 : vector<8x256xf32>
    %cst_17 = arith.constant dense<0.000000e+00> : vector<8xf32>
    %50 = vector.multi_reduction <add>, %49, %cst_17 [1] : vector<8x256xf32> to vector<8xf32>
    %51 = vector.shape_cast %50 : vector<8xf32> to vector<8x1xf32>
    %52 = arith.subf %45, %51 : vector<8x1xf32>
    %cst_18 = arith.constant 2.500000e+01 : f32
    %53 = vector.broadcast %cst_18 : f32 to vector<8x256xf32>
    %54 = arith.subf %5, %53 : vector<8x256xf32>
    %55 = math.tanh %54 : vector<8x256xf32>
    %cst_19 = arith.constant dense<0.000000e+00> : vector<8xf32>
    %56 = vector.multi_reduction <add>, %55, %cst_19 [1] : vector<8x256xf32> to vector<8xf32>
    %57 = vector.shape_cast %56 : vector<8xf32> to vector<8x1xf32>
    %58 = arith.subf %51, %57 : vector<8x1xf32>
    %cst_20 = arith.constant 2.812500e+01 : f32
    %59 = vector.broadcast %cst_20 : f32 to vector<8x256xf32>
    %60 = arith.subf %5, %59 : vector<8x256xf32>
    %61 = math.tanh %60 : vector<8x256xf32>
    %cst_21 = arith.constant dense<0.000000e+00> : vector<8xf32>
    %62 = vector.multi_reduction <add>, %61, %cst_21 [1] : vector<8x256xf32> to vector<8xf32>
    %63 = vector.shape_cast %62 : vector<8xf32> to vector<8x1xf32>
    %64 = arith.subf %57, %63 : vector<8x1xf32>
    %cst_22 = arith.constant 3.125000e+01 : f32
    %65 = vector.broadcast %cst_22 : f32 to vector<8x256xf32>
    %66 = arith.subf %5, %65 : vector<8x256xf32>
    %67 = math.tanh %66 : vector<8x256xf32>
    %cst_23 = arith.constant dense<0.000000e+00> : vector<8xf32>
    %68 = vector.multi_reduction <add>, %67, %cst_23 [1] : vector<8x256xf32> to vector<8xf32>
    %69 = vector.shape_cast %68 : vector<8xf32> to vector<8x1xf32>
    %70 = arith.subf %63, %69 : vector<8x1xf32>
    %cst_24 = arith.constant 3.437500e+01 : f32
    %71 = vector.broadcast %cst_24 : f32 to vector<8x256xf32>
    %72 = arith.subf %5, %71 : vector<8x256xf32>
    %73 = math.tanh %72 : vector<8x256xf32>
    %cst_25 = arith.constant dense<0.000000e+00> : vector<8xf32>
    %74 = vector.multi_reduction <add>, %73, %cst_25 [1] : vector<8x256xf32> to vector<8xf32>
    %75 = vector.shape_cast %74 : vector<8xf32> to vector<8x1xf32>
    %76 = arith.subf %69, %75 : vector<8x1xf32>
    %cst_26 = arith.constant 3.750000e+01 : f32
    %77 = vector.broadcast %cst_26 : f32 to vector<8x256xf32>
    %78 = arith.subf %5, %77 : vector<8x256xf32>
    %79 = math.tanh %78 : vector<8x256xf32>
    %cst_27 = arith.constant dense<0.000000e+00> : vector<8xf32>
    %80 = vector.multi_reduction <add>, %79, %cst_27 [1] : vector<8x256xf32> to vector<8xf32>
    %81 = vector.shape_cast %80 : vector<8xf32> to vector<8x1xf32>
    %82 = arith.subf %75, %81 : vector<8x1xf32>
    %cst_28 = arith.constant 4.062500e+01 : f32
    %83 = vector.broadcast %cst_28 : f32 to vector<8x256xf32>
    %84 = arith.subf %5, %83 : vector<8x256xf32>
    %85 = math.tanh %84 : vector<8x256xf32>
    %cst_29 = arith.constant dense<0.000000e+00> : vector<8xf32>
    %86 = vector.multi_reduction <add>, %85, %cst_29 [1] : vector<8x256xf32> to vector<8xf32>
    %87 = vector.shape_cast %86 : vector<8xf32> to vector<8x1xf32>
    %88 = arith.subf %81, %87 : vector<8x1xf32>
    %cst_30 = arith.constant 4.375000e+01 : f32
    %89 = vector.broadcast %cst_30 : f32 to vector<8x256xf32>
    %90 = arith.subf %5, %89 : vector<8x256xf32>
    %91 = math.tanh %90 : vector<8x256xf32>
    %cst_31 = arith.constant dense<0.000000e+00> : vector<8xf32>
    %92 = vector.multi_reduction <add>, %91, %cst_31 [1] : vector<8x256xf32> to vector<8xf32>
    %93 = vector.shape_cast %92 : vector<8xf32> to vector<8x1xf32>
    %94 = arith.subf %87, %93 : vector<8x1xf32>
    %cst_32 = arith.constant 4.687500e+01 : f32
    %95 = vector.broadcast %cst_32 : f32 to vector<8x256xf32>
    %96 = arith.subf %5, %95 : vector<8x256xf32>
    %97 = math.tanh %96 : vector<8x256xf32>
    %cst_33 = arith.constant dense<0.000000e+00> : vector<8xf32>
    %98 = vector.multi_reduction <add>, %97, %cst_33 [1] : vector<8x256xf32> to vector<8xf32>
    %99 = vector.shape_cast %98 : vector<8xf32> to vector<8x1xf32>
    %100 = arith.subf %93, %99 : vector<8x1xf32>
    %cst_34 = arith.constant 5.000000e+01 : f32
    %101 = vector.broadcast %cst_34 : f32 to vector<8x256xf32>
    %102 = arith.subf %5, %101 : vector<8x256xf32>
    %103 = math.tanh %102 : vector<8x256xf32>
    %cst_35 = arith.constant dense<0.000000e+00> : vector<8xf32>
    %104 = vector.multi_reduction <add>, %103, %cst_35 [1] : vector<8x256xf32> to vector<8xf32>
    %105 = vector.shape_cast %104 : vector<8xf32> to vector<8x1xf32>
    %106 = arith.subf %99, %105 : vector<8x1xf32>
    %c0_36 = arith.constant 0 : index
    %c0_37 = arith.constant 0 : index
    %107 = vector.load %arg3[%c0_36, %c0_37] : memref<8x16xf32, #tpu.memory_space<vmem>>, vector<8x16xf32>
    %108 = tpu.concatenate %16, %22, %28, %34, %40, %46, %52, %58, %64, %70, %76, %82, %88, %94, %100, %106 in 1 : vector<8x1xf32>, vector<8x1xf32>, vector<8x1xf32>, vector<8x1xf32>, vector<8x1xf32>, vector<8x1xf32>, vector<8x1xf32>, vector<8x1xf32>, vector<8x1xf32>, vector<8x1xf32>, vector<8x1xf32>, vector<8x1xf32>, vector<8x1xf32>, vector<8x1xf32>, vector<8x1xf32>, vector<8x1xf32> -> vector<8x16xf32>
    %cst_38 = arith.constant 5.000000e-01 : f32
    %109 = vector.broadcast %cst_38 : f32 to vector<8x16xf32>
    %110 = arith.mulf %109, %108 : vector<8x16xf32>
    %111 = arith.addf %107, %110 : vector<8x16xf32>
    %c0_39 = arith.constant 0 : index
    %c0_40 = arith.constant 0 : index
    %112 = vector.load %arg3[%c0_39, %c0_40] : memref<8x16xf32, #tpu.memory_space<vmem>>, vector<8x16xf32>
    tpu.vector_store %arg3[%c0_39, %c0_40], %111 {strides = array<i32>} : memref<8x16xf32, #tpu.memory_space<vmem>>, vector<8x16xf32>,
    return
  }
  func.func @transform_0(%arg0: i32, %arg1: i32) -> (i32, i32) {
    %c0_i32 = arith.constant 0 : i32
    return %arg0, %arg1 : i32, i32
  }
  func.func @transform_1(%arg0: i32, %arg1: i32) -> (i32, i32) {
    %c0_i32 = arith.constant 0 : i32
    %c0_i32_0 = arith.constant 0 : i32
    return %arg0, %c0_i32 : i32, i32
  }
}

</mosaic_0001>

<llo_original>
// kernel: tpu_custom_call.1
$region0: #{tpu_custom_call.1}
  #allocation0 [shape = 'u32[]', space=smem, size = 0x4, offset = 0x4, fixed_abs, tag = 'smem constant byte address 0x4 - core index']
  #allocation1 [shape = 'u32[144,128]{1,0:T(1,128)}', space=vmem, size = 0x12000, scoped, tag = 'internal scratch']
  %s0 = inlined_call_operand.hbm [shape: f32[8,256], index: 0, kind: input, shape index: {}]
  %s1 = inlined_call_operand.hbm [shape: f32[8,16], index: 1, kind: output, shape index: {}]
  %s2 = sld [smem:[#allocation0]]
  $region22: #{tpu_custom_call.1} parent=0
    _
  %s4 = ssub.s32 1, %s2
  %s5 = scalar_select 0, %s4, %s2
  $region1: #{tpu_custom_call.1} parent=0
    #allocation2 [shape = 'u8[8192]{0}', space=vmem, size = 0x2000, scoped, tag = 'input window, operand 0, single buffered']
    #allocation3 [shape = 's32[1]{0}', space=sflag, size = 0x4, scoped, tag = 'scoped memory for tpu_custom_call.1']
    #allocation4 [shape = 's32[1]{0}', space=sflag, size = 0x4, scoped, tag = 'scoped memory for tpu_custom_call.1']
    #allocation5 [shape = 'u8[4096]{0}', space=vmem, size = 0x1000, scoped, tag = 'output window, operand 0, single buffered']
    %6 = vsyncpa [#allocation3], 0
    %7 = vsyncpa [#allocation4], 0
    // Predicated region
    $region2: #{tpu_custom_call.1} parent=1 // pred_check
      _
    $region3: #{tpu_custom_call.1} parent=1 // pred_check_branch
      %9 = sbr.rel (0) target = $region5
    $region4: #{tpu_custom_call.1} parent=1 // pred_region
      %s11 = ssub.s32 256, 256
      %12 = vsyncadd [#allocation3], %s11
      %s14 = sshll.u32 [#allocation2], 4
      %s15 = int_to_ptr.vmem [resolvable:$true] %s14
      %17 = dma.hbm_to_vmem [thread:$0]  %s0, 256, %s15, [#allocation3]
    $region5: #{tpu_custom_call.1} parent=1 // pred_fallthru
      _
    // Predicated region
    $region6: #{tpu_custom_call.1} parent=1 // pred_check
      _
    $region7: #{tpu_custom_call.1} parent=1 // pred_check_branch
      %19 = sbr.rel (0) target = $region9
    $region8: #{tpu_custom_call.1} parent=1 // pred_region
      %20 = dma.done [#allocation3], 256
    $region9: #{tpu_custom_call.1} parent=1 // pred_fallthru
      _
    %p21 = scmp.eq.s32.totalorder 0, 0
    // Predicated region
    $region10: #{tpu_custom_call.1} parent=1 // pred_check
      %p22 = pneg %p21
    $region11: #{tpu_custom_call.1} parent=1 // pred_check_branch
      %24 = sbr.rel (%p22) target = $region13
    $region12: #{tpu_custom_call.1} parent=1 // pred_region
      %vm25 = vcmask 130048
      %26 = vst.msk [vmem:[#allocation5] sm:$0xff] %vm25, 0.0
    $region13: #{tpu_custom_call.1} parent=1 // pred_fallthru
      _
    %v27 = vld [vmem:[#allocation2] sm:$0xff]
    %v28 = vld [vmem:[#allocation2 + $0x8] sm:$0xff]
    %v29 = vmul.f32 %v27, 50.0
    %v30 = vmul.f32 %v28, 50.0
    %v31 = vtanh.pop %v29
    %v32 = vtanh.pop %v30
    %v33 = vadd.f32 %v31, %v32
    %34 = vadd.xlane.f32.xlu0 %v33
    %v35 = vpop.xlane.xlu0 %34
    %v36 = vsub.f32 %v29, 3.125
    %v37 = vsub.f32 %v30, 3.125
    %v38 = vtanh.pop %v36
    %v39 = vtanh.pop %v37
    %v40 = vadd.f32 %v38, %v39
    %41 = vadd.xlane.f32.xlu0 %v40
    %v42 = vpop.xlane.xlu0 %41
    %v43 = vsub.f32 %v35, %v42
    %v44 = vsub.f32 %v29, 6.25
    %v45 = vsub.f32 %v30, 6.25
    %v46 = vtanh.pop %v44
    %v47 = vtanh.pop %v45
    %v48 = vadd.f32 %v46, %v47
    %49 = vadd.xlane.f32.xlu0 %v48
    %v50 = vpop.xlane.xlu0 %49
    %v51 = vsub.f32 %v42, %v50
    %v52 = vsub.f32 %v29, 9.375
    %v53 = vsub.f32 %v30, 9.375
    %v54 = vtanh.pop %v52
    %v55 = vtanh.pop %v53
    %v56 = vadd.f32 %v54, %v55
    %57 = vadd.xlane.f32.xlu0 %v56
    %v58 = vpop.xlane.xlu0 %57
    %v59 = vsub.f32 %v50, %v58
    %v60 = vsub.f32 %v29, 12.5
    %v61 = vsub.f32 %v30, 12.5
    %v62 = vtanh.pop %v60
    %v63 = vtanh.pop %v61
    %v64 = vadd.f32 %v62, %v63
    %65 = vadd.xlane.f32.xlu0 %v64
    %v66 = vpop.xlane.xlu0 %65
    %v67 = vsub.f32 %v58, %v66
    %v68 = vsub.f32 %v29, 15.625
    %v69 = vsub.f32 %v30, 15.625
    %v70 = vtanh.pop %v68
    %v71 = vtanh.pop %v69
    %v72 = vadd.f32 %v70, %v71
    %73 = vadd.xlane.f32.xlu0 %v72
    %v74 = vpop.xlane.xlu0 %73
    %v75 = vsub.f32 %v66, %v74
    %v76 = vsub.f32 %v29, 18.75
    %v77 = vsub.f32 %v30, 18.75
    %v78 = vtanh.pop %v76
    %v79 = vtanh.pop %v77
    %v80 = vadd.f32 %v78, %v79
    %81 = vadd.xlane.f32.xlu0 %v80
    %v82 = vpop.xlane.xlu0 %81
    %v83 = vsub.f32 %v74, %v82
    %v84 = vsub.f32 %v29, 21.875
    %v85 = vsub.f32 %v30, 21.875
    %v86 = vtanh.pop %v84
    %v87 = vtanh.pop %v85
    %v88 = vadd.f32 %v86, %v87
    %89 = vadd.xlane.f32.xlu0 %v88
    %v90 = vpop.xlane.xlu0 %89
    %v91 = vsub.f32 %v82, %v90
    %v92 = vsub.f32 %v29, 25.0
    %v93 = vsub.f32 %v30, 25.0
    %v94 = vtanh.pop %v92
    %v95 = vtanh.pop %v93
    %v96 = vadd.f32 %v94, %v95
    %97 = vadd.xlane.f32.xlu0 %v96
    %v98 = vpop.xlane.xlu0 %97
    %v99 = vsub.f32 %v90, %v98
    %v100 = vsub.f32 %v29, 28.125
    %v101 = vsub.f32 %v30, 28.125
    %v102 = vtanh.pop %v100
    %v103 = vtanh.pop %v101
    %v104 = vadd.f32 %v102, %v103
    %105 = vadd.xlane.f32.xlu0 %v104
    %v106 = vpop.xlane.xlu0 %105
    %v107 = vsub.f32 %v98, %v106
    %v108 = vsub.f32 %v29, 31.25
    %v109 = vsub.f32 %v30, 31.25
    %v110 = vtanh.pop %v108
    %v111 = vtanh.pop %v109
    %v112 = vadd.f32 %v110, %v111
    %113 = vadd.xlane.f32.xlu0 %v112
    %v114 = vpop.xlane.xlu0 %113
    %v115 = vsub.f32 %v106, %v114
    %v116 = vsub.f32 %v29, 34.375
    %v117 = vsub.f32 %v30, 34.375
    %v118 = vtanh.pop %v116
    %v119 = vtanh.pop %v117
    %v120 = vadd.f32 %v118, %v119
    %121 = vadd.xlane.f32.xlu0 %v120
    %v122 = vpop.xlane.xlu0 %121
    %v123 = vsub.f32 %v114, %v122
    %v124 = vsub.f32 %v29, 37.5
    %v125 = vsub.f32 %v30, 37.5
    %v126 = vtanh.pop %v124
    %v127 = vtanh.pop %v125
    %v128 = vadd.f32 %v126, %v127
    %129 = vadd.xlane.f32.xlu0 %v128
    %v130 = vpop.xlane.xlu0 %129
    %v131 = vsub.f32 %v122, %v130
    %v132 = vsub.f32 %v29, 40.625
    %v133 = vsub.f32 %v30, 40.625
    %v134 = vtanh.pop %v132
    %v135 = vtanh.pop %v133
    %v136 = vadd.f32 %v134, %v135
    %137 = vadd.xlane.f32.xlu0 %v136
    %v138 = vpop.xlane.xlu0 %137
    %v139 = vsub.f32 %v130, %v138
    %v140 = vsub.f32 %v29, 43.75
    %v141 = vsub.f32 %v30, 43.75
    %v142 = vtanh.pop %v140
    %v143 = vtanh.pop %v141
    %v144 = vadd.f32 %v142, %v143
    %145 = vadd.xlane.f32.xlu0 %v144
    %v146 = vpop.xlane.xlu0 %145
    %v147 = vsub.f32 %v138, %v146
    %v148 = vsub.f32 %v29, 46.875
    %v149 = vsub.f32 %v30, 46.875
    %v150 = vtanh.pop %v148
    %v151 = vtanh.pop %v149
    %v152 = vadd.f32 %v150, %v151
    %153 = vadd.xlane.f32.xlu0 %v152
    %v154 = vpop.xlane.xlu0 %153
    %v155 = vsub.f32 %v146, %v154
    %v156 = vsub.f32 %v29, 50.0
    %v157 = vsub.f32 %v30, 50.0
    %v158 = vtanh.pop %v156
    %v159 = vtanh.pop %v157
    %v160 = vadd.f32 %v158, %v159
    %161 = vadd.xlane.f32.xlu0 %v160
    %v162 = vpop.xlane.xlu0 %161
    %v163 = vsub.f32 %v154, %v162
    %v164 = vld [vmem:[#allocation5] sm:$0xff]
    %vm165 = vcmask 7168
    %v166 = vsel %vm165, %v43, %v51
    %vm167 = vcmask 15360
    %v168 = vsel %vm167, %v166, %v59
    %vm169 = vcmask 23552
    %v170 = vsel %vm169, %v168, %v67
    %vm171 = vcmask 31744
    %v172 = vsel %vm171, %v170, %v75
    %vm173 = vcmask 39936
    %v174 = vsel %vm173, %v172, %v83
    %vm175 = vcmask 48128
    %v176 = vsel %vm175, %v174, %v91
    %vm177 = vcmask 56320
    %v178 = vsel %vm177, %v176, %v99
    %vm179 = vcmask 64512
    %v180 = vsel %vm179, %v178, %v107
    %vm181 = vcmask 72704
    %v182 = vsel %vm181, %v180, %v115
    %vm183 = vcmask 80896
    %v184 = vsel %vm183, %v182, %v123
    %vm185 = vcmask 89088
    %v186 = vsel %vm185, %v184, %v131
    %vm187 = vcmask 97280
    %v188 = vsel %vm187, %v186, %v139
    %vm189 = vcmask 105472
    %v190 = vsel %vm189, %v188, %v147
    %vm191 = vcmask 113664
    %v192 = vsel %vm191, %v190, %v155
    %vm193 = vcmask 121856
    %v194 = vsel %vm193, %v192, %v163
    %v195 = vmul.f32 %v194, 0.5
    %v196 = vadd.f32 %v164, %v195
    %vm197 = vcmask 130048
    %198 = vst.msk [vmem:[#allocation5] sm:$0xff] %vm197, %v196
    // Predicated region
    $region14: #{tpu_custom_call.1} parent=1 // pred_check
      _
    $region15: #{tpu_custom_call.1} parent=1 // pred_check_branch
      %200 = sbr.rel (0) target = $region17
    $region16: #{tpu_custom_call.1} parent=1 // pred_region
      %s202 = ssub.s32 128, 128
      %203 = vsyncadd [#allocation4], %s202
      %s205 = sshll.u32 [#allocation5], 4
      %s206 = int_to_ptr.vmem [resolvable:$true] %s205
      %208 = dma.vmem_to_hbm [thread:$0]  %s206, 128, %s1, [#allocation4]
    $region17: #{tpu_custom_call.1} parent=1 // pred_fallthru
      _
    // Predicated region
    $region18: #{tpu_custom_call.1} parent=1 // pred_check
      _
    $region19: #{tpu_custom_call.1} parent=1 // pred_check_branch
      %210 = sbr.rel (0) target = $region21
    $region20: #{tpu_custom_call.1} parent=1 // pred_region
      %211 = dma.done [#allocation4], 128
    $region21: #{tpu_custom_call.1} parent=1 // pred_fallthru
      _
    %212 = vsyncpa [#allocation3], 1
    %213 = vsyncpa [#allocation4], 1

</llo_original>
